<compile_context>
chip_gen: v7x
topology: tpu7x:2x2x1
jax: 0.10.0
libtpu: 0.0.40
codegen_flags: <defaults>
</compile_context>

<pallas_src>
import functools

import jax
import jax.numpy as jnp
from jax import lax
from jax.experimental import pallas as pl
from jax.experimental.pallas import tpu as pltpu


def _round_up(x, m):
    return ((x + m - 1) // m) * m


def _supcon_kernel(s_ref, c_ref, a_ref, bT_ref, o_ref, m_ref, l_ref, *,
                   n, loss_scale):
    i = pl.program_id(0)          # anchor-row tile   (parallel)
    j = pl.program_id(1)          # contrast-col tile (arbitrary / reduction)
    nj = pl.num_programs(1)
    tm = a_ref.shape[0]
    tn = bT_ref.shape[1]

    @pl.when(j == 0)
    def _init():
        m_ref[...] = jnp.full_like(m_ref, -1e30)
        l_ref[...] = jnp.zeros_like(l_ref)

    # [tm,tn] scaled logits straight off the MXU: anchor rows were pre-scaled
    # by 1/T in f32 in the wrapper; contrast block arrives pre-transposed as
    # [d,tn], so this is a canonical [tm,d]x[d,tn] contraction (no vxpose).
    logits = jnp.dot(a_ref[...], bT_ref[...],
                     preferred_element_type=jnp.float32)

    # Scalar predicates: masking is only needed on boundary tiles.
    row_start = i * tm
    col_start = j * tn
    col_end = col_start + tn
    touches_pad = col_end > n                                # n..n_pad padding
    has_diag = jnp.logical_and(row_start < col_end,
                               col_start < row_start + tm)   # overlaps diagonal
    needs_mask = jnp.logical_or(touches_pad, has_diag)

    m_prev = m_ref[...]

    @pl.when(needs_mask)
    def _boundary_tile():
        row_idx = row_start + lax.broadcasted_iota(jnp.int32, (tm, 1), 0)
        col_idx = col_start + lax.broadcasted_iota(jnp.int32, (1, tn), 1)
        valid_col = col_idx < n                              # [1,tn]
        denom_mask = jnp.logical_and(valid_col, row_idx != col_idx)
        # Max over valid columns (diagonal included, as in the reference).
        tile_max = jnp.max(jnp.where(valid_col, logits, -1e30),
                           axis=1, keepdims=True)
        m_new = jnp.maximum(m_prev, tile_max)
        # exp() sees only finite raw logits; masked lanes are select-discarded.
        e = jnp.where(denom_mask, jnp.exp(logits - m_new), 0.0)
        l_ref[...] = (jnp.exp(m_prev - m_new) * l_ref[...]
                      + jnp.sum(e, axis=1, keepdims=True))
        m_ref[...] = m_new

    @pl.when(jnp.logical_not(needs_mask))
    def _interior_tile():
        tile_max = jnp.max(logits, axis=1, keepdims=True)
        m_new = jnp.maximum(m_prev, tile_max)
        e = jnp.exp(logits - m_new)
        l_ref[...] = (jnp.exp(m_prev - m_new) * l_ref[...]
                      + jnp.sum(e, axis=1, keepdims=True))
        m_ref[...] = m_new

    @pl.when(j == nj - 1)
    def _finalize():
        m = m_ref[...]
        l = l_ref[...]
        s = s_ref[...]
        c = c_ref[...]
        log_denom = jnp.log(l + 1e-6)        # reference adds 1e-6 to the sum
        #   sum_pos log_prob = s - c*(m + log_denom)
        mean_log_prob_pos = (s - c * (m + log_denom)) / jnp.maximum(c, 1.0)
        loss_rows = loss_scale * mean_log_prob_pos           # [tm,1]
        # Anchors with no positives (c==0) and padded rows contribute 0.
        # (The PyTorch reference produces NaN via 0/0 here; intentional
        # divergence, documented.)
        loss_rows = jnp.where(c > 0.0, loss_rows, 0.0)
        o_ref[...] = jnp.broadcast_to(loss_rows, o_ref.shape)   # lane-dense


def supcon_loss_pallas(features, labels=None, mask=None,
                       temperature=0.07, contrast_mode='all',
                       base_temperature=0.2, compute_dtype=jnp.bfloat16):
    """features: [bsz, n_views, feat_dim] (extra trailing dims are flattened)."""
    if features.ndim < 3:
        raise ValueError('`features` needs to be [bsz, n_views, ...]')
    if features.ndim > 3:
        features = features.reshape(features.shape[0], features.shape[1], -1)
    bsz, n_views, d = features.shape

    if labels is not None and mask is not None:
        raise ValueError('Cannot define both `labels` and `mask`')
    if mask is not None:
        # TODO(synk): explicit (possibly asymmetric) bsz x bsz `mask` path is not
        # wired into the label-based statistics; pass labels instead.
        raise NotImplementedError('explicit `mask` argument not implemented')
    if labels is None:
        labels = jnp.arange(bsz, dtype=jnp.int32)     # SimCLR: mask = eye(bsz)
    else:
        labels = jnp.asarray(labels).reshape(-1).astype(jnp.int32)
        if labels.shape[0] != bsz:
            raise ValueError('Num of labels does not match num of features')

    if contrast_mode == 'all':
        anchor_count = n_views
    elif contrast_mode == 'one':
        # TODO(synk): 'one' mode (rectangular anchor block) not implemented.
        raise NotImplementedError("contrast_mode='one' not implemented")
    else:
        raise ValueError(f'Unknown mode: {contrast_mode}')

    n = bsz * anchor_count
    inv_temp = float(1.0 / temperature)
    loss_scale = float(-(temperature / base_temperature))

    feats_f32 = features.astype(jnp.float32)
    # contrast_feature = cat(unbind(features, dim=1), dim=0)  (view-major)
    contrast = jnp.transpose(feats_f32, (1, 0, 2)).reshape(n, d)

    # ---- positive-pair statistics, pulled out of the O(N^2) kernel ----------
    # For anchor i with original sample b = i % bsz:
    #   s_i = (1/T) * (f_i . g_{class(b)} - ||f_i||^2)   (sum of positive logits)
    #   c_i = n_views * count(class(b)) - 1               (number of positives)
    eq = (labels[:, None] == labels[None, :]).astype(jnp.float32)    # [bsz,bsz]
    class_sum = eq @ feats_f32.sum(axis=1)                           # [bsz,d]
    count = eq.sum(axis=1)                                           # [bsz]
    g_full = jnp.tile(class_sum, (n_views, 1))                       # [n,d]
    s = inv_temp * (jnp.sum(contrast * g_full, axis=1)
                    - jnp.sum(contrast * contrast, axis=1))          # [n]
    c = n_views * jnp.tile(count, n_views) - 1.0                     # [n]

    # ---- tiling / padding ---------------------------------------------------
    tn = 256 if n > 128 else 128          # contrast (lane) tile
    n_pad = _round_up(n, tn)
    tm = 128                               # anchor (sublane) tile
    if n_pad // tm < 2:
        tm = 64   # guarantee >= 2 row tiles so v7x's 2nd TensorCore gets work

    # Anchor rows pre-scaled by 1/T in f32 (single rounding before the cast);
    # contrast rows fed pre-transposed [d, n_pad] as the canonical MXU rhs.
    feat_rows = jnp.zeros((n_pad, d), dtype=compute_dtype).at[:n].set(
        (contrast * inv_temp).astype(compute_dtype))
    feat_cols_T = jnp.zeros((d, n_pad), dtype=compute_dtype).at[:, :n].set(
        contrast.T.astype(compute_dtype))
    s_col = jnp.zeros((n_pad, 1), jnp.float32).at[:n, 0].set(s)
    c_col = jnp.zeros((n_pad, 1), jnp.float32).at[:n, 0].set(c)   # padded: c=0

    kernel = functools.partial(_supcon_kernel, n=n, loss_scale=loss_scale)
    grid = (n_pad // tm, n_pad // tn)
    per_row = pl.pallas_call(
        kernel,
        out_shape=jax.ShapeDtypeStruct((n_pad, 128), jnp.float32),
        grid_spec=pltpu.PrefetchScalarGridSpec(
            num_scalar_prefetch=0,
            grid=grid,
            in_specs=[
                pl.BlockSpec((tm, 1), lambda i, j: (i, 0)),    # s (pos-logit sum)
                pl.BlockSpec((tm, 1), lambda i, j: (i, 0)),    # c (pos count)
                pl.BlockSpec((tm, d), lambda i, j: (i, 0)),    # anchor rows (scaled)
                pl.BlockSpec((d, tn), lambda i, j: (0, j)),    # contrast cols^T
            ],
            out_specs=pl.BlockSpec((tm, 128), lambda i, j: (i, 0)),
            scratch_shapes=[pltpu.VMEM((tm, 1), jnp.float32)] * 2,  # m, l
        ),
        # Tiles are a few MiB double-buffered: safe against v5e's 16 MiB default
        # scoped VMEM and v7x's 64 MiB total, so no vmem_limit_bytes override.
        compiler_params=pltpu.CompilerParams(
            dimension_semantics=("parallel", "arbitrary")),
    )(s_col, c_col, feat_rows, feat_cols_T)

    # All 128 lanes carry the same per-row loss; padded / no-positive rows are 0.
    # loss.view(anchor_count, batch_size).mean() == mean over all N anchors.
    return jnp.sum(per_row) / (n * 128)


def _supcon_loss_ref(features, labels, temperature=0.07, base_temperature=0.2):
    """Pure-JAX reference mirroring the PyTorch forward (for sanity checks)."""
    bsz, n_views, d = features.shape
    labels = labels.reshape(-1, 1)
    mask = (labels == labels.T).astype(jnp.float32)
    contrast = jnp.transpose(features, (1, 0, 2)).reshape(n_views * bsz, d)
    # Scale folded into one matmul operand (mathematically identical to
    # torch.div(torch.matmul(a, c.T), T)); keeps the reference numerically
    # aligned with the kernel under TPU's default f32 matmul precision.
    logits = jnp.dot(contrast * (1.0 / temperature), contrast.T)
    logits = logits - jnp.max(logits, axis=1, keepdims=True)
    n = n_views * bsz
    mask = jnp.tile(mask, (n_views, n_views))
    logits_mask = 1.0 - jnp.eye(n, dtype=jnp.float32)
    mask = mask * logits_mask
    exp_logits = jnp.exp(logits) * logits_mask
    log_prob = logits - jnp.log(exp_logits.sum(1, keepdims=True) + 1e-6)
    mean_log_prob_pos = (mask * log_prob).sum(1) / mask.sum(1)
    loss = -(temperature / base_temperature) * mean_log_prob_pos
    return loss.reshape(n_views, bsz).mean()


if __name__ == "__main__":
    key = jax.random.PRNGKey(0)
    kf, kl = jax.random.split(key)

    bsz, n_views, feat_dim = 4, 2, 32
    features = jax.random.normal(kf, (bsz, n_views, feat_dim), dtype=jnp.float32)
    # L2-normalize per view (typical SupCon usage; does not change semantics).
    features = features / jnp.linalg.norm(features, axis=-1, keepdims=True)
    labels = jax.random.randint(kl, (bsz,), 0, 2, dtype=jnp.int32)

    ref = _supcon_loss_ref(features, labels)

    # f32 feature path: tight check of the kernel math (tiling / online softmax
    # / boundary-gated masks / wrapper-side positive statistics).
    loss_f32 = jax.block_until_ready(
        supcon_loss_pallas(features, labels=labels, compute_dtype=jnp.float32))
    assert jnp.allclose(loss_f32, ref, atol=1e-3, rtol=1e-3), (loss_f32, ref)

    # Default bf16 feature path (halves feature HBM traffic, 2x MXU rate on
    # v6e/v7x); looser tolerance accounts for bf16 operand quantization.
    loss_bf16 = jax.block_until_ready(supcon_loss_pallas(features, labels=labels))
    assert jnp.allclose(loss_bf16, ref, atol=5e-2, rtol=5e-2), (loss_bf16, ref)

    # SimCLR (unsupervised) path: labels=None == eye(bsz) mask == arange labels.
    loss_simclr = jax.block_until_ready(
        supcon_loss_pallas(features, compute_dtype=jnp.float32))
    ref_simclr = _supcon_loss_ref(features, jnp.arange(bsz, dtype=jnp.int32))
    assert jnp.allclose(loss_simclr, ref_simclr, atol=1e-3, rtol=1e-3), (
        loss_simclr, ref_simclr)

    print("KERNEL_OK")
</pallas_src>

<mosaic_0001>
module attributes {stable_mosaic.version = 11 : i64} {
  func.func @_supcon_kernel(%arg0: i32, %arg1: i32, %arg2: memref<64x1xf32, #tpu.memory_space<vmem>>, %arg3: memref<64x1xf32, #tpu.memory_space<vmem>>, %arg4: memref<64x32xf32, #tpu.memory_space<vmem>>, %arg5: memref<32x128xf32, #tpu.memory_space<vmem>>, %arg6: memref<64x128xf32, #tpu.memory_space<vmem>>, %arg7: memref<64x1xf32, #tpu.memory_space<vmem>>, %arg8: memref<64x1xf32, #tpu.memory_space<vmem>>) attributes {dimension_semantics = [#tpu.dimension_semantics<parallel>, #tpu.dimension_semantics<arbitrary>], iteration_bounds = array<i64: 2, 1>, scalar_prefetch = 0 : i64, scratch_operands = 2 : i64, tpu.core_type = #tpu.core_type<tc>, window_params = [{transform_indices = @transform_0, window_bounds = array<i64: 64, 1>}, {transform_indices = @transform_1, window_bounds = array<i64: 64, 1>}, {transform_indices = @transform_2, window_bounds = array<i64: 64, 32>}, {transform_indices = @transform_3, window_bounds = array<i64: 32, 128>}, {transform_indices = @transform_4, window_bounds = array<i64: 64, 128>}]} {
    %c0_i32 = arith.constant 0 : i32
    %0 = arith.cmpi eq, %arg1, %c0_i32 : i32
    %1 = arith.extui %0 : i1 to i32
    %c0_i32_0 = arith.constant 0 : i32
    %2 = arith.cmpi ne, %1, %c0_i32_0 : i32
    scf.if %2 {
      %cst_12 = arith.constant -1.000000e+30 : f32
      %24 = vector.broadcast %cst_12 : f32 to vector<64x1xf32>
      %c0_13 = arith.constant 0 : index
      %c0_14 = arith.constant 0 : index
      %25 = vector.load %arg7[%c0_13, %c0_14] : memref<64x1xf32, #tpu.memory_space<vmem>>, vector<64x1xf32>
      tpu.vector_store %arg7[%c0_13, %c0_14], %24 {strides = array<i32>} : memref<64x1xf32, #tpu.memory_space<vmem>>, vector<64x1xf32>,
      %cst_15 = arith.constant 0.000000e+00 : f32
      %26 = vector.broadcast %cst_15 : f32 to vector<64x1xf32>
      %c0_16 = arith.constant 0 : index
      %c0_17 = arith.constant 0 : index
      %27 = vector.load %arg8[%c0_16, %c0_17] : memref<64x1xf32, #tpu.memory_space<vmem>>, vector<64x1xf32>
      tpu.vector_store %arg8[%c0_16, %c0_17], %26 {strides = array<i32>} : memref<64x1xf32, #tpu.memory_space<vmem>>, vector<64x1xf32>,
    } else {
    }
    %c0 = arith.constant 0 : index
    %c0_1 = arith.constant 0 : index
    %3 = vector.load %arg4[%c0, %c0_1] : memref<64x32xf32, #tpu.memory_space<vmem>>, vector<64x32xf32>
    %c0_2 = arith.constant 0 : index
    %c0_3 = arith.constant 0 : index
    %4 = vector.load %arg5[%c0_2, %c0_3] : memref<32x128xf32, #tpu.memory_space<vmem>>, vector<32x128xf32>
    %cst = arith.constant dense<0.000000e+00> : vector<64x128xf32>
    %5 = tpu.matmul %3, %4, %cst {dimension_numbers = #tpu.dot_dimension_numbers<[1], [0], [0], [1], [0, 0, 1, 1], [], []>} : vector<64x32xf32>, vector<32x128xf32>, vector<64x128xf32> -> vector<64x128xf32>
    %c64_i32 = arith.constant 64 : i32
    %6 = arith.muli %arg0, %c64_i32 : i32
    %c128_i32 = arith.constant 128 : i32
    %7 = arith.muli %arg1, %c128_i32 : i32
    %c128_i32_4 = arith.constant 128 : i32
    %8 = arith.addi %7, %c128_i32_4 : i32
    %c8_i32 = arith.constant 8 : i32
    %9 = arith.cmpi sgt, %8, %c8_i32 : i32
    %10 = arith.cmpi slt, %6, %8 : i32
    %c64_i32_5 = arith.constant 64 : i32
    %11 = arith.addi %6, %c64_i32_5 : i32
    %12 = arith.cmpi slt, %7, %11 : i32
    %13 = arith.andi %10, %12 : i1
    %14 = arith.ori %9, %13 : i1
    %c0_6 = arith.constant 0 : index
    %c0_7 = arith.constant 0 : index
    %15 = vector.load %arg7[%c0_6, %c0_7] : memref<64x1xf32, #tpu.memory_space<vmem>>, vector<64x1xf32>
    %16 = arith.extui %14 : i1 to i32
    %c0_i32_8 = arith.constant 0 : i32
    %17 = arith.cmpi ne, %16, %c0_i32_8 : i32
    scf.if %17 {
      %24 = tpu.iota {dimensions = array<i32: 0>} : vector<64x1xi32>
      %25 = vector.broadcast %6 : i32 to vector<64x1xi32>
      %26 = arith.addi %25, %24 : vector<64x1xi32>
      %27 = tpu.iota {dimensions = array<i32: 1>} : vector<1x128xi32>
      %28 = vector.broadcast %7 : i32 to vector<1x128xi32>
      %29 = arith.addi %28, %27 : vector<1x128xi32>
      %c8_i32_12 = arith.constant 8 : i32
      %30 = vector.broadcast %c8_i32_12 : i32 to vector<1x128xi32>
      %31 = arith.cmpi slt, %29, %30 : vector<1x128xi32>
      %32 = vector.broadcast %26 : vector<64x1xi32> to vector<64x128xi32>
      %33 = vector.broadcast %29 : vector<1x128xi32> to vector<64x128xi32>
      %34 = arith.cmpi ne, %32, %33 : vector<64x128xi32>
      %35 = vector.broadcast %31 : vector<1x128xi1> to vector<64x128xi1>
      %36 = arith.andi %35, %34 : vector<64x128xi1>
      %cst_13 = arith.constant -1.000000e+30 : f32
      %37 = vector.shape_cast %31 : vector<1x128xi1> to vector<1x128xi1>
      %38 = vector.broadcast %37 : vector<1x128xi1> to vector<64x128xi1>
      %39 = vector.broadcast %cst_13 : f32 to vector<64x128xf32>
      %40 = arith.select %38, %5, %39 : vector<64x128xi1>, vector<64x128xf32>
      %cst_14 = arith.constant dense<0xFF800000> : vector<64xf32>
      %41 = vector.multi_reduction <maximumf>, %40, %cst_14 [1] : vector<64x128xf32> to vector<64xf32>
      %42 = vector.shape_cast %41 : vector<64xf32> to vector<64x1xf32>
      %43 = arith.maximumf %15, %42 : vector<64x1xf32>
      %44 = vector.broadcast %43 : vector<64x1xf32> to vector<64x128xf32>
      %45 = arith.subf %5, %44 : vector<64x128xf32>
      %46 = math.exp %45 : vector<64x128xf32>
      %cst_15 = arith.constant 0.000000e+00 : f32
      %47 = vector.broadcast %cst_15 : f32 to vector<64x128xf32>
      %48 = arith.select %36, %46, %47 : vector<64x128xi1>, vector<64x128xf32>
      %49 = arith.subf %15, %43 : vector<64x1xf32>
      %50 = math.exp %49 : vector<64x1xf32>
      %c0_16 = arith.constant 0 : index
      %c0_17 = arith.constant 0 : index
      %51 = vector.load %arg8[%c0_16, %c0_17] : memref<64x1xf32, #tpu.memory_space<vmem>>, vector<64x1xf32>
      %52 = arith.mulf %50, %51 : vector<64x1xf32>
      %cst_18 = arith.constant dense<0.000000e+00> : vector<64xf32>
      %53 = vector.multi_reduction <add>, %48, %cst_18 [1] : vector<64x128xf32> to vector<64xf32>
      %54 = vector.shape_cast %53 : vector<64xf32> to vector<64x1xf32>
      %55 = arith.addf %52, %54 : vector<64x1xf32>
      %c0_19 = arith.constant 0 : index
      %c0_20 = arith.constant 0 : index
      %56 = vector.load %arg8[%c0_19, %c0_20] : memref<64x1xf32, #tpu.memory_space<vmem>>, vector<64x1xf32>
      tpu.vector_store %arg8[%c0_19, %c0_20], %55 {strides = array<i32>} : memref<64x1xf32, #tpu.memory_space<vmem>>, vector<64x1xf32>,
      %c0_21 = arith.constant 0 : index
      %c0_22 = arith.constant 0 : index
      %57 = vector.load %arg7[%c0_21, %c0_22] : memref<64x1xf32, #tpu.memory_space<vmem>>, vector<64x1xf32>
      tpu.vector_store %arg7[%c0_21, %c0_22], %43 {strides = array<i32>} : memref<64x1xf32, #tpu.memory_space<vmem>>, vector<64x1xf32>,
    } else {
    }
    %true = arith.constant true
    %18 = arith.xori %14, %true : i1
    %19 = arith.extui %18 : i1 to i32
    %c0_i32_9 = arith.constant 0 : i32
    %20 = arith.cmpi ne, %19, %c0_i32_9 : i32
    scf.if %20 {
      %cst_12 = arith.constant dense<0xFF800000> : vector<64xf32>
      %24 = vector.multi_reduction <maximumf>, %5, %cst_12 [1] : vector<64x128xf32> to vector<64xf32>
      %25 = vector.shape_cast %24 : vector<64xf32> to vector<64x1xf32>
      %26 = arith.maximumf %15, %25 : vector<64x1xf32>
      %27 = vector.broadcast %26 : vector<64x1xf32> to vector<64x128xf32>
      %28 = arith.subf %5, %27 : vector<64x128xf32>
      %29 = math.exp %28 : vector<64x128xf32>
      %30 = arith.subf %15, %26 : vector<64x1xf32>
      %31 = math.exp %30 : vector<64x1xf32>
      %c0_13 = arith.constant 0 : index
      %c0_14 = arith.constant 0 : index
      %32 = vector.load %arg8[%c0_13, %c0_14] : memref<64x1xf32, #tpu.memory_space<vmem>>, vector<64x1xf32>
      %33 = arith.mulf %31, %32 : vector<64x1xf32>
      %cst_15 = arith.constant dense<0.000000e+00> : vector<64xf32>
      %34 = vector.multi_reduction <add>, %29, %cst_15 [1] : vector<64x128xf32> to vector<64xf32>
      %35 = vector.shape_cast %34 : vector<64xf32> to vector<64x1xf32>
      %36 = arith.addf %33, %35 : vector<64x1xf32>
      %c0_16 = arith.constant 0 : index
      %c0_17 = arith.constant 0 : index
      %37 = vector.load %arg8[%c0_16, %c0_17] : memref<64x1xf32, #tpu.memory_space<vmem>>, vector<64x1xf32>
      tpu.vector_store %arg8[%c0_16, %c0_17], %36 {strides = array<i32>} : memref<64x1xf32, #tpu.memory_space<vmem>>, vector<64x1xf32>,
      %c0_18 = arith.constant 0 : index
      %c0_19 = arith.constant 0 : index
      %38 = vector.load %arg7[%c0_18, %c0_19] : memref<64x1xf32, #tpu.memory_space<vmem>>, vector<64x1xf32>
      tpu.vector_store %arg7[%c0_18, %c0_19], %26 {strides = array<i32>} : memref<64x1xf32, #tpu.memory_space<vmem>>, vector<64x1xf32>,
    } else {
    }
    %c0_i32_10 = arith.constant 0 : i32
    %21 = arith.cmpi eq, %arg1, %c0_i32_10 : i32
    %22 = arith.extui %21 : i1 to i32
    %c0_i32_11 = arith.constant 0 : i32
    %23 = arith.cmpi ne, %22, %c0_i32_11 : i32
    scf.if %23 {
      %c0_12 = arith.constant 0 : index
      %c0_13 = arith.constant 0 : index
      %24 = vector.load %arg7[%c0_12, %c0_13] : memref<64x1xf32, #tpu.memory_space<vmem>>, vector<64x1xf32>
      %c0_14 = arith.constant 0 : index
      %c0_15 = arith.constant 0 : index
      %25 = vector.load %arg8[%c0_14, %c0_15] : memref<64x1xf32, #tpu.memory_space<vmem>>, vector<64x1xf32>
      %c0_16 = arith.constant 0 : index
      %c0_17 = arith.constant 0 : index
      %26 = vector.load %arg2[%c0_16, %c0_17] : memref<64x1xf32, #tpu.memory_space<vmem>>, vector<64x1xf32>
      %c0_18 = arith.constant 0 : index
      %c0_19 = arith.constant 0 : index
      %27 = vector.load %arg3[%c0_18, %c0_19] : memref<64x1xf32, #tpu.memory_space<vmem>>, vector<64x1xf32>
      %cst_20 = arith.constant 9.99999997E-7 : f32
      %28 = vector.broadcast %cst_20 : f32 to vector<64x1xf32>
      %29 = arith.addf %25, %28 : vector<64x1xf32>
      %30 = math.log %29 : vector<64x1xf32>
      %31 = arith.addf %24, %30 : vector<64x1xf32>
      %32 = arith.mulf %27, %31 : vector<64x1xf32>
      %33 = arith.subf %26, %32 : vector<64x1xf32>
      %cst_21 = arith.constant 1.000000e+00 : f32
      %34 = vector.broadcast %cst_21 : f32 to vector<64x1xf32>
      %35 = arith.maximumf %27, %34 : vector<64x1xf32>
      %36 = arith.divf %33, %35 : vector<64x1xf32>
      %cst_22 = arith.constant -3.500000e-01 : f32
      %37 = vector.broadcast %cst_22 : f32 to vector<64x1xf32>
      %38 = arith.mulf %37, %36 : vector<64x1xf32>
      %cst_23 = arith.constant 0.000000e+00 : f32
      %39 = vector.broadcast %cst_23 : f32 to vector<64x1xf32>
      %40 = arith.cmpf ogt, %27, %39 : vector<64x1xf32>
      %cst_24 = arith.constant 0.000000e+00 : f32
      %41 = vector.broadcast %cst_24 : f32 to vector<64x1xf32>
      %42 = arith.select %40, %38, %41 : vector<64x1xi1>, vector<64x1xf32>
      %43 = vector.shape_cast %42 : vector<64x1xf32> to vector<64x1xf32>
      %44 = vector.broadcast %43 : vector<64x1xf32> to vector<64x128xf32>
      %c0_25 = arith.constant 0 : index
      %c0_26 = arith.constant 0 : index
      %45 = vector.load %arg6[%c0_25, %c0_26] : memref<64x128xf32, #tpu.memory_space<vmem>>, vector<64x128xf32>
      tpu.vector_store %arg6[%c0_25, %c0_26], %44 {strides = array<i32>} : memref<64x128xf32, #tpu.memory_space<vmem>>, vector<64x128xf32>,
    } else {
    }
    return
  }
  func.func @transform_0(%arg0: i32, %arg1: i32) -> (i32, i32) {
    %c0_i32 = arith.constant 0 : i32
    %c0_i32_0 = arith.constant 0 : i32
    return %arg0, %c0_i32 : i32, i32
  }
  func.func @transform_1(%arg0: i32, %arg1: i32) -> (i32, i32) {
    %c0_i32 = arith.constant 0 : i32
    %c0_i32_0 = arith.constant 0 : i32
    return %arg0, %c0_i32 : i32, i32
  }
  func.func @transform_2(%arg0: i32, %arg1: i32) -> (i32, i32) {
    %c0_i32 = arith.constant 0 : i32
    %c0_i32_0 = arith.constant 0 : i32
    return %arg0, %c0_i32 : i32, i32
  }
  func.func @transform_3(%arg0: i32, %arg1: i32) -> (i32, i32) {
    %c0_i32 = arith.constant 0 : i32
    %c0_i32_0 = arith.constant 0 : i32
    return %c0_i32, %arg1 : i32, i32
  }
  func.func @transform_4(%arg0: i32, %arg1: i32) -> (i32, i32) {
    %c0_i32 = arith.constant 0 : i32
    %c0_i32_0 = arith.constant 0 : i32
    return %arg0, %c0_i32 : i32, i32
  }
}

</mosaic_0001>

<llo_original>
// kernel: tpu_custom_call.1
$region0: #{tpu_custom_call.1}
  #allocation0 [shape = 'u32[]', space=smem, size = 0x4, offset = 0x4, fixed_abs, tag = 'smem constant byte address 0x4 - core index']
  #allocation1 [shape = 'u32[144,128]{1,0:T(1,128)}', space=vmem, size = 0x12000, scoped, tag = 'internal scratch']
  #allocation2 [shape = 'f32[64,1]{1,0:T(8,128)}', space=vmem, size = 0x8000, scoped, tag = 'scratch operand']
  #allocation3 [shape = 'f32[64,1]{1,0:T(8,128)}', space=vmem, size = 0x8000, scoped, tag = 'scratch operand']
  %s0 = inlined_call_operand.vmem [shape: f32[128,1], index: 0, kind: input, shape index: {}]
  %s1 = inlined_call_operand.vmem [shape: f32[128,1], index: 1, kind: input, shape index: {}]
  %s2 = inlined_call_operand.vmem [shape: f32[128,32], index: 2, kind: input, shape index: {}]
  %s3 = inlined_call_operand.vmem [shape: f32[32,128], index: 3, kind: input, shape index: {}]
  %s4 = inlined_call_operand.hbm [shape: f32[128,128], index: 4, kind: output, shape index: {}]
  %s5 = sld [smem:[#allocation0]]
  $region65: #{tpu_custom_call.1} parent=0
    _
  %s7 = ssub.s32 1, %s5
  %s8 = scalar_select 0, %s7, %s5
  $region1: #{tpu_custom_call.1} parent=0
    #allocation4 [shape = 'u8[65536]{0}', space=vmem, size = 0x10000, scoped, tag = 'output window, operand 0']
    #allocation5 [shape = 's32[2]{0}', space=sflag, size = 0x8, scoped, tag = 'scoped memory for tpu_custom_call.1']
    %9 = vsyncpa [#allocation5], 0
    %s10 = scalar_lea.sflag [#allocation5], 1
    %11 = vsyncpa %s10, 0
    loop: start=0, step=1, limit=4
    $region2: #{tpu_custom_call.1} parent=1 // loop_pre_header
      _
    $region3: #{tpu_custom_call.1} parent=1 // loop_header
      %s13 = sphi 0, %s17
      %p14 = scmp.ge.s32.totalorder %s13, 4
      %s20 = sphi 0, %s32
      %s21 = sphi 0, %s28
      %s22 = sphi 0, %s20
      %s23 = sphi 0, %s21
      %s24 = sphi 0, %s22
      %s25 = sphi 0, %s23
      %s35 = sphi 0, %s37
      %s38 = sphi 0, %s35
      %s39 = sphi 0, %s38
      %s55 = sphi 0, %s39
      %s61 = sphi 0, %s63
      %s64 = sphi 0, %s61
      %s65 = sphi 0, %s64
      %s81 = sphi 0, %s65
      %s87 = sphi 0, %s89
      %s90 = sphi 0, %s87
      %s91 = sphi 0, %s90
      %s107 = sphi 0, %s91
      %s113 = sphi 0, %s115
      %s116 = sphi 0, %s113
      %s117 = sphi 0, %s116
      %s133 = sphi 0, %s117
      %s139 = sphi 0, %s141
      %s142 = sphi 0, %s139
      %s143 = sphi 0, %s142
      %s159 = sphi 0, %s143
    $region4: #{tpu_custom_call.1} parent=1 // loop_header_branch
      %16 = sbr.rel (%p14) target = $region8
    $region5: #{tpu_custom_call.1} parent=1 // loop_body
      %s18 = ssub.s32 %s13, 1
      %s19 = ssub.s32 %s13, 2
      %s26 = sadd.s32 1, %s21
      %p27 = scmp.ge.s32.totalorder %s26, 1
      %s28 = scalar_select %p27, 0, %s26
      %s29 = sadd.s32 1, %s20
      %s30 = scalar_select %p27, %s29, %s20
      %p31 = scmp.ge.s32.totalorder %s30, 2
      %s32 = scalar_select %p31, 0, %s30
      %s33 = ssub.s32 %s20, %s32
      %p34 = scmp.eq.s32.totalorder %s33, 0
      %s36 = sadd.s32 %s35, 1
      %s37 = scalar_select %p34, %s35, %s36
      %p40 = pneg %p34
      %p41 = scmp.eq.s32.totalorder %s13, 1
      %p42 = por %p40, %p41
      %p43 = scmp.ne.s32.totalorder %s35, %s38
      %p44 = scmp.eq.s32.totalorder %s13, 0
      %p45 = por %p43, %p44
      %p46 = scmp.ne.s32.totalorder %s35, %s38
      %p47 = scmp.eq.s32.totalorder %s18, 1
      %p48 = por %p46, %p47
      %p49 = scmp.ne.s32.totalorder %s38, %s39
      %p50 = scmp.eq.s32.totalorder %s18, 0
      %p51 = por %p49, %p50
      %p52 = scmp.ne.s32.totalorder %s38, %s39
      %p53 = scmp.eq.s32.totalorder %s19, 1
      %p54 = por %p52, %p53
      %p56 = scmp.ne.s32.totalorder %s39, %s55
      %p57 = scmp.eq.s32.totalorder %s19, 0
      %p58 = por %p56, %p57
      %s59 = ssub.s32 %s20, %s32
      %p60 = scmp.eq.s32.totalorder %s59, 0
      %s62 = sadd.s32 %s61, 1
      %s63 = scalar_select %p60, %s61, %s62
      %p66 = pneg %p60
      %p67 = scmp.eq.s32.totalorder %s13, 1
      %p68 = por %p66, %p67
      %p69 = scmp.ne.s32.totalorder %s61, %s64
      %p70 = scmp.eq.s32.totalorder %s13, 0
      %p71 = por %p69, %p70
      %p72 = scmp.ne.s32.totalorder %s61, %s64
      %p73 = scmp.eq.s32.totalorder %s18, 1
      %p74 = por %p72, %p73
      %p75 = scmp.ne.s32.totalorder %s64, %s65
      %p76 = scmp.eq.s32.totalorder %s18, 0
      %p77 = por %p75, %p76
      %p78 = scmp.ne.s32.totalorder %s64, %s65
      %p79 = scmp.eq.s32.totalorder %s19, 1
      %p80 = por %p78, %p79
      %p82 = scmp.ne.s32.totalorder %s65, %s81
      %p83 = scmp.eq.s32.totalorder %s19, 0
      %p84 = por %p82, %p83
      %s85 = ssub.s32 %s20, %s32
      %p86 = scmp.eq.s32.totalorder %s85, 0
      %s88 = sadd.s32 %s87, 1
      %s89 = scalar_select %p86, %s87, %s88
      %p92 = pneg %p86
      %p93 = scmp.eq.s32.totalorder %s13, 1
      %p94 = por %p92, %p93
      %p95 = scmp.ne.s32.totalorder %s87, %s90
      %p96 = scmp.eq.s32.totalorder %s13, 0
      %p97 = por %p95, %p96
      %p98 = scmp.ne.s32.totalorder %s87, %s90
      %p99 = scmp.eq.s32.totalorder %s18, 1
      %p100 = por %p98, %p99
      %p101 = scmp.ne.s32.totalorder %s90, %s91
      %p102 = scmp.eq.s32.totalorder %s18, 0
      %p103 = por %p101, %p102
      %p104 = scmp.ne.s32.totalorder %s90, %s91
      %p105 = scmp.eq.s32.totalorder %s19, 1
      %p106 = por %p104, %p105
      %p108 = scmp.ne.s32.totalorder %s91, %s107
      %p109 = scmp.eq.s32.totalorder %s19, 0
      %p110 = por %p108, %p109
      %s111 = ssub.s32 %s21, %s28
      %p112 = scmp.eq.s32.totalorder %s111, 0
      %s114 = sadd.s32 %s113, 1
      %s115 = scalar_select %p112, %s113, %s114
      %p118 = pneg %p112
      %p119 = scmp.eq.s32.totalorder %s13, 1
      %p120 = por %p118, %p119
      %p121 = scmp.ne.s32.totalorder %s113, %s116
      %p122 = scmp.eq.s32.totalorder %s13, 0
      %p123 = por %p121, %p122
      %p124 = scmp.ne.s32.totalorder %s113, %s116
      %p125 = scmp.eq.s32.totalorder %s18, 1
      %p126 = por %p124, %p125
      %p127 = scmp.ne.s32.totalorder %s116, %s117
      %p128 = scmp.eq.s32.totalorder %s18, 0
      %p129 = por %p127, %p128
      %p130 = scmp.ne.s32.totalorder %s116, %s117
      %p131 = scmp.eq.s32.totalorder %s19, 1
      %p132 = por %p130, %p131
      %p134 = scmp.ne.s32.totalorder %s117, %s133
      %p135 = scmp.eq.s32.totalorder %s19, 0
      %p136 = por %p134, %p135
      %s137 = ssub.s32 %s20, %s32
      %p138 = scmp.eq.s32.totalorder %s137, 0
      %s140 = sadd.s32 %s139, 1
      %s141 = scalar_select %p138, %s139, %s140
      %p144 = pneg %p138
      %p145 = scmp.eq.s32.totalorder %s13, 1
      %p146 = por %p144, %p145
      %p147 = scmp.ne.s32.totalorder %s139, %s142
      %p148 = scmp.eq.s32.totalorder %s13, 0
      %p149 = por %p147, %p148
      %p150 = scmp.ne.s32.totalorder %s139, %s142
      %p151 = scmp.eq.s32.totalorder %s18, 1
      %p152 = por %p150, %p151
      %p153 = scmp.ne.s32.totalorder %s142, %s143
      %p154 = scmp.eq.s32.totalorder %s18, 0
      %p155 = por %p153, %p154
      %p156 = scmp.ne.s32.totalorder %s142, %s143
      %p157 = scmp.eq.s32.totalorder %s19, 1
      %p158 = por %p156, %p157
      %p160 = scmp.ne.s32.totalorder %s143, %s159
      %p161 = scmp.eq.s32.totalorder %s19, 0
      %p162 = por %p160, %p161
      %p163 = scmp.le.s32.totalorder 1, %s13
      %p164 = scmp.lt.s32.totalorder %s13, 3
      %p165 = pnand %p163, %p164
      %p166 = pneg %p165
      // Predicated region
      $region9: #{tpu_custom_call.1} parent=5 // pred_check
        _
      $region10: #{tpu_custom_call.1} parent=5 // pred_check_branch
        %168 = sbr.rel (%p165) target = $region12
      $region11: #{tpu_custom_call.1} parent=5 // pred_region
        %s169 = ssub.s32 %s13, 1
        // Predicated region
        $region13: #{tpu_custom_call.1} parent=11 // pred_check
          %p170 = pneg %p129
        $region14: #{tpu_custom_call.1} parent=11 // pred_check_branch
          %172 = sbr.rel (%p170) target = $region16
        $region15: #{tpu_custom_call.1} parent=11 // pred_region
          %p173 = scmp.lt.s32.totalorder %s23, 0
          %s174 = scalar_select %p173, %s23, 0
          %s175 = smul.addr %s174, 8
          %s176 = scalar_lea.vmem %s3, %s175
        $region16: #{tpu_custom_call.1} parent=11 // pred_fallthru
          _
      $region12: #{tpu_custom_call.1} parent=5 // pred_fallthru
        _
      %p177 = scmp.lt.s32.totalorder %s13, 2
      // Predicated region
      $region17: #{tpu_custom_call.1} parent=5 // pred_check
        %p178 = pneg %p177
      $region18: #{tpu_custom_call.1} parent=5 // pred_check_branch
        %180 = sbr.rel (%p178) target = $region20
      $region19: #{tpu_custom_call.1} parent=5 // pred_region
        // Predicated region
        $region21: #{tpu_custom_call.1} parent=19 // pred_check
          %p181 = pneg %p45
        $region22: #{tpu_custom_call.1} parent=19 // pred_check_branch
          %183 = sbr.rel (%p181) target = $region24
        $region23: #{tpu_custom_call.1} parent=19 // pred_region
          %s184 = smul.u32 8, %s20
          %p185 = scmp.lt.s32.totalorder %s184, 15
          %s186 = scalar_select %p185, %s184, 15
          %s187 = smul.addr %s186, 8
          %s188 = scalar_lea.vmem %s0, %s187
          %s189 = smul.u32 8, %s20
        $region24: #{tpu_custom_call.1} parent=19 // pred_fallthru
          _
        // Predicated region
        $region25: #{tpu_custom_call.1} parent=19 // pred_check
          %p190 = pneg %p71
        $region26: #{tpu_custom_call.1} parent=19 // pred_check_branch
          %192 = sbr.rel (%p190) target = $region28
        $region27: #{tpu_custom_call.1} parent=19 // pred_region
          %s193 = smul.u32 8, %s20
          %p194 = scmp.lt.s32.totalorder %s193, 15
          %s195 = scalar_select %p194, %s193, 15
          %s196 = smul.addr %s195, 8
          %s197 = scalar_lea.vmem %s1, %s196
          %s198 = smul.u32 8, %s20
        $region28: #{tpu_custom_call.1} parent=19 // pred_fallthru
          _
        // Predicated region
        $region29: #{tpu_custom_call.1} parent=19 // pred_check
          %p199 = pneg %p97
        $region30: #{tpu_custom_call.1} parent=19 // pred_check_branch
          %201 = sbr.rel (%p199) target = $region32
        $region31: #{tpu_custom_call.1} parent=19 // pred_region
          %s202 = smul.u32 8, %s20
          %p203 = scmp.lt.s32.totalorder %s202, 15
          %s204 = scalar_select %p203, %s202, 15
          %s205 = smul.addr %s204, 8
          %s206 = scalar_lea.vmem %s2, %s205
          %s207 = smul.u32 8, %s20
        $region32: #{tpu_custom_call.1} parent=19 // pred_fallthru
          _
      $region20: #{tpu_custom_call.1} parent=5 // pred_fallthru
        _
      %p208 = scmp.le.s32.totalorder 1, %s13
      %p209 = scmp.lt.s32.totalorder %s13, 3
      %p210 = pnand %p208, %p209
      %p211 = pneg %p210
      // Predicated region
      $region33: #{tpu_custom_call.1} parent=5 // pred_check
        _
      $region34: #{tpu_custom_call.1} parent=5 // pred_check_branch
        %213 = sbr.rel (%p210) target = $region36
      $region35: #{tpu_custom_call.1} parent=5 // pred_region
        %s214 = ssub.s32 %s13, 1
        %s215 = smul.u32 8, %s22
        %p216 = scmp.lt.s32.totalorder %s215, 15
        %s217 = scalar_select %p216, %s215, 15
        %s218 = smul.addr %s217, 8
        %s219 = scalar_lea.vmem %s0, %s218
        %p220 = pneg %p51
        %p221 = pneg %p48
        %s222 = smul.u32 8, %s22
        %p223 = scmp.lt.s32.totalorder %s222, 15
        %s224 = scalar_select %p223, %s222, 15
        %s225 = smul.addr %s224, 8
        %s226 = scalar_lea.vmem %s1, %s225
        %p227 = pneg %p77
        %p228 = pneg %p74
        %s229 = smul.u32 8, %s22
        %p230 = scmp.lt.s32.totalorder %s229, 15
        %s231 = scalar_select %p230, %s229, 15
        %s232 = smul.addr %s231, 8
        %s233 = scalar_lea.vmem %s2, %s232
        %p234 = pneg %p103
        %p235 = pneg %p100
        %p236 = scmp.lt.s32.totalorder %s23, 0
        %s237 = scalar_select %p236, %s23, 0
        %s238 = smul.addr %s237, 8
        %s239 = scalar_lea.vmem %s3, %s238
        %p240 = pneg %p129
        %p241 = pneg %p126
        %p242 = pneg %p155
        %p243 = pneg %p152
        %s244 = sand.u32 %s142, 1
        %s245 = scalar_lea.sflag [#allocation5], %s244
        %s246 = sand.u32 %s142, 1
        %s247 = smul.addr %s246, 64
        %s248 = scalar_lea.vmem [#allocation4], %s247
        %s249 = smul.u32 8, %s22
        %p250 = scmp.lt.s32.totalorder %s249, 15
        %s251 = scalar_select %p250, %s249, 15
        %s252 = smul.addr %s251, 8
        %s253 = scalar_lea.vmem %s0, %s252
        %s254 = smul.u32 8, %s22
        %s255 = smul.u32 8, %s22
        %p256 = scmp.lt.s32.totalorder %s255, 15
        %s257 = scalar_select %p256, %s255, 15
        %s258 = smul.addr %s257, 8
        %s259 = scalar_lea.vmem %s1, %s258
        %s260 = smul.u32 8, %s22
        %s261 = smul.u32 8, %s22
        %p262 = scmp.lt.s32.totalorder %s261, 15
        %s263 = scalar_select %p262, %s261, 15
        %s264 = smul.addr %s263, 8
        %s265 = scalar_lea.vmem %s2, %s264
        %s266 = smul.u32 8, %s22
        %p267 = scmp.lt.s32.totalorder %s23, 0
        %s268 = scalar_select %p267, %s23, 0
        %s269 = smul.addr %s268, 8
        %s270 = scalar_lea.vmem %s3, %s269
        %s271 = smul.u32 8, %s22
        %p272 = scmp.eq.s32.totalorder %s23, 0
        // Predicated region
        $region37: #{tpu_custom_call.1} parent=35 // pred_check
          %p273 = pneg %p272
        $region38: #{tpu_custom_call.1} parent=35 // pred_check_branch
          %275 = sbr.rel (%p273) target = $region40
        $region39: #{tpu_custom_call.1} parent=35 // pred_region
          %vm276 = vcmask 7168
          %277 = vst.msk [vmem:[#allocation2] sm:$0xff] %vm276, -1e+30
          %278 = vst.msk [vmem:[#allocation2 + $0x8] sm:$0xff] %vm276, -1e+30
          %279 = vst.msk [vmem:[#allocation2 + $0x10] sm:$0xff] %vm276, -1e+30
          %280 = vst.msk [vmem:[#allocation2 + $0x18] sm:$0xff] %vm276, -1e+30
          %281 = vst.msk [vmem:[#allocation2 + $0x20] sm:$0xff] %vm276, -1e+30
          %282 = vst.msk [vmem:[#allocation2 + $0x28] sm:$0xff] %vm276, -1e+30
          %283 = vst.msk [vmem:[#allocation2 + $0x30] sm:$0xff] %vm276, -1e+30
          %284 = vst.msk [vmem:[#allocation2 + $0x38] sm:$0xff] %vm276, -1e+30
          %285 = vst.msk [vmem:[#allocation3] sm:$0xff] %vm276, 0.0
          %286 = vst.msk [vmem:[#allocation3 + $0x8] sm:$0xff] %vm276, 0.0
          %287 = vst.msk [vmem:[#allocation3 + $0x10] sm:$0xff] %vm276, 0.0
          %288 = vst.msk [vmem:[#allocation3 + $0x18] sm:$0xff] %vm276, 0.0
          %289 = vst.msk [vmem:[#allocation3 + $0x20] sm:$0xff] %vm276, 0.0
          %290 = vst.msk [vmem:[#allocation3 + $0x28] sm:$0xff] %vm276, 0.0
          %291 = vst.msk [vmem:[#allocation3 + $0x30] sm:$0xff] %vm276, 0.0
          %292 = vst.msk [vmem:[#allocation3 + $0x38] sm:$0xff] %vm276, 0.0
        $region40: #{tpu_custom_call.1} parent=35 // pred_fallthru
          _
        %v293 = vld [vmem:[%s265] sm:$0xff]
        %v294 = vld [vmem:[%s265 + $0x8] sm:$0xff]
        %v295 = vld [vmem:[%s265 + $0x10] sm:$0xff]
        %v296 = vld [vmem:[%s265 + $0x18] sm:$0xff]
        %v297 = vld [vmem:[%s265 + $0x20] sm:$0xff]
        %v298 = vld [vmem:[%s265 + $0x28] sm:$0xff]
        %v299 = vld [vmem:[%s265 + $0x30] sm:$0xff]
        %v300 = vld [vmem:[%s265 + $0x38] sm:$0xff]
        %v301 = vld [vmem:[%s270] sm:$0xff]
        %v302 = vld [vmem:[%s270 + $0x8] sm:$0xff]
        %v303 = vld [vmem:[%s270 + $0x10] sm:$0xff]
        %v304 = vld [vmem:[%s270 + $0x18] sm:$0xff]
        %vm305 = vcmask 261120
        %v307 = vsel %vm305, %v293, 0
        %v310 = vsel %vm305, %v294, 0
        %v313 = vsel %vm305, %v295, 0
        %v316 = vsel %vm305, %v296, 0
        %v319 = vsel %vm305, %v297, 0
        %v322 = vsel %vm305, %v298, 0
        %v325 = vsel %vm305, %v299, 0
        %v328 = vsel %vm305, %v300, 0
        %330 = vmatprep.subr.mxu0 0.0
        %331 = vmatpush1.msra.mxu0 %v301
        %332 = vmatprep.subr.mxu0 0.0
        %333 = vmatpush1.msra.mxu0 %v302
        %334 = vmatprep.subr.mxu0 0.0
        %335 = vmatpush1.msra.mxu0 %v303
        %336 = vmatprep.subr.mxu0 0.0
        %337 = vmatpush1.msra.mxu0 %v304
        %338 = vmatprep.subr.mxu0 0.0
        %339 = vmatpush1.msra.mxu0 0.0
        %340 = vmatprep.subr.mxu0 0.0
        %341 = vmatpush1.msra.mxu0 0.0
        %342 = vmatprep.subr.mxu0 0.0
        %343 = vmatpush1.msra.mxu0 0.0
        %344 = vmatprep.subr.mxu0 0.0
        %345 = vmatpush1.msra.mxu0 0.0
        %346 = vmatprep.subr.mxu0 0.0
        %347 = vmatpush1.msra.mxu0 0.0
        %348 = vmatprep.subr.mxu0 0.0
        %349 = vmatpush1.msra.mxu0 0.0
        %350 = vmatprep.subr.mxu0 0.0
        %351 = vmatpush1.msra.mxu0 0.0
        %352 = vmatprep.subr.mxu0 0.0
        %353 = vmatpush1.msra.mxu0 0.0
        %354 = vmatprep.subr.mxu0 0.0
        %355 = vmatpush1.msra.mxu0 0.0
        %356 = vmatprep.subr.mxu0 0.0
        %357 = vmatpush1.msra.mxu0 0.0
        %358 = vmatprep.subr.mxu0 0.0
        %359 = vmatpush1.msra.mxu0 0.0
        %360 = vmatprep.subr.mxu0 0.0
        %361 = vmatpush1.msra.mxu0 0.0
        %362 = vmatprep.subr.mxu0 0.0
        %363 = vmatpush1.msra.mxu0 0.0
        %364 = vmatprep.subr.mxu0 0.0
        %365 = vmatpush1.msra.mxu0 0.0
        %366 = vmatprep.subr.mxu0 0.0
        %367 = vmatpush1.msra.mxu0 0.0
        %368 = vmatprep.subr.mxu0 0.0
        %369 = vmatpush1.msra.mxu0 0.0
        %370 = vmatprep.subr.mxu0 0.0
        %371 = vmatpush1.msra.mxu0 0.0
        %372 = vmatprep.subr.mxu0 0.0
        %373 = vmatpush1.msra.mxu0 0.0
        %374 = vmatprep.subr.mxu0 0.0
        %375 = vmatpush1.msra.mxu0 0.0
        %376 = vmatprep.subr.mxu0 0.0
        %377 = vmatpush1.msra.mxu0 0.0
        %378 = vmatprep.subr.mxu0 0.0
        %379 = vmatpush1.msra.mxu0 0.0
        %380 = vmatprep.subr.mxu0 0.0
        %381 = vmatpush1.msra.mxu0 0.0
        %382 = vmatprep.subr.mxu0 0.0
        %383 = vmatpush1.msra.mxu0 0.0
        %384 = vmatprep.subr.mxu0 0.0
        %385 = vmatpush1.msra.mxu0 0.0
        %386 = vmatprep.subr.mxu0 0.0
        %387 = vmatpush1.msra.mxu0 0.0
        %388 = vmatprep.subr.mxu0 0.0
        %389 = vmatpush1.msra.mxu0 0.0
        %390 = vmatprep.subr.mxu0 0.0
        %391 = vmatpush1.msra.mxu0 0.0
        %392 = vmatprep.subr.mxu0 0.0
        %393 = vmatpush1.msra.mxu0 0.0
        %394 = vmatprep.mubr.f32.mxu0 0.0
        %395 = vmatmul.mubr.f32.gmra.mrb[0].mxu0 %v307
        %v396 = vpop.f32.mrb[0].mxu0
        %v397 = vadd.f32 0.0, %v396
        %v398 = vpop.f32.mrb[0].mxu0
        %399 = vmatprep.mubr.f32.mxu0 0.0
        %400 = vmatmul.mubr.f32.gmra.mrb[0].mxu0 %v310
        %v401 = vpop.f32.mrb[0].mxu0
        %v402 = vadd.f32 0.0, %v401
        %v403 = vpop.f32.mrb[0].mxu0
        %404 = vmatprep.mubr.f32.mxu0 0.0
        %405 = vmatmul.mubr.f32.gmra.mrb[0].mxu0 %v313
        %v406 = vpop.f32.mrb[0].mxu0
        %v407 = vadd.f32 0.0, %v406
        %v408 = vpop.f32.mrb[0].mxu0
        %409 = vmatprep.mubr.f32.mxu0 0.0
        %410 = vmatmul.mubr.f32.gmra.mrb[0].mxu0 %v316
        %v411 = vpop.f32.mrb[0].mxu0
        %v412 = vadd.f32 0.0, %v411
        %v413 = vpop.f32.mrb[0].mxu0
        %414 = vmatprep.mubr.f32.mxu0 0.0
        %415 = vmatmul.mubr.f32.gmra.mrb[0].mxu0 %v319
        %v416 = vpop.f32.mrb[0].mxu0
        %v417 = vadd.f32 0.0, %v416
        %v418 = vpop.f32.mrb[0].mxu0
        %419 = vmatprep.mubr.f32.mxu0 0.0
        %420 = vmatmul.mubr.f32.gmra.mrb[0].mxu0 %v322
        %v421 = vpop.f32.mrb[0].mxu0
        %v422 = vadd.f32 0.0, %v421
        %v423 = vpop.f32.mrb[0].mxu0
        %424 = vmatprep.mubr.f32.mxu0 0.0
        %425 = vmatmul.mubr.f32.gmra.mrb[0].mxu0 %v325
        %v426 = vpop.f32.mrb[0].mxu0
        %v427 = vadd.f32 0.0, %v426
        %v428 = vpop.f32.mrb[0].mxu0
        %429 = vmatprep.mubr.f32.mxu0 0.0
        %430 = vmatmul.mubr.f32.gmra.mrb[0].mxu0 %v328
        %v431 = vpop.f32.mrb[0].mxu0
        %v432 = vadd.f32 0.0, %v431
        %v433 = vpop.f32.mrb[0].mxu0
        %434 = vdwg.mxu0
        %s435 = smul.u32 %s22, 64
        %s436 = smul.u32 %s23, 128
        %s437 = sadd.s32 %s436, 128
        %p438 = scmp.gt.s32.totalorder %s437, 8
        %p439 = scmp.lt.s32.totalorder %s435, %s437
        %s440 = sadd.s32 %s435, 64
        %p441 = scmp.lt.s32.totalorder %s436, %s440
        %p442 = pnand %p439, %p441
        %p443 = pneg %p442
        %p444 = por %p438, %p443
        %v445 = vld [vmem:[#allocation2] sm:$0xff]
        %v446 = vld [vmem:[#allocation2 + $0x8] sm:$0xff]
        %v447 = vld [vmem:[#allocation2 + $0x10] sm:$0xff]
        %v448 = vld [vmem:[#allocation2 + $0x18] sm:$0xff]
        %v449 = vld [vmem:[#allocation2 + $0x20] sm:$0xff]
        %v450 = vld [vmem:[#allocation2 + $0x28] sm:$0xff]
        %v451 = vld [vmem:[#allocation2 + $0x30] sm:$0xff]
        %v452 = vld [vmem:[#allocation2 + $0x38] sm:$0xff]
        // Predicated region
        $region41: #{tpu_custom_call.1} parent=35 // pred_check
          %p453 = pneg %p444
        $region42: #{tpu_custom_call.1} parent=35 // pred_check_branch
          %455 = sbr.rel (%p453) target = $region44
        $region43: #{tpu_custom_call.1} parent=35 // pred_region
          %v456 = vlaneseq
          %v457 = vshrl.u32 %v456, 7
          %v458 = vadd.s32 %v457, 8
          %v459 = vadd.s32 %v457, 16
          %v460 = vadd.s32 %v457, 24
          %v461 = vadd.s32 %v457, 32
          %v462 = vadd.s32 %v457, 40
          %v463 = vadd.s32 %v457, 48
          %v464 = vadd.s32 %v457, 56
          %v465 = vstv %s435
          %v466 = vadd.s32 %v465, %v457
          %v467 = vadd.s32 %v465, %v458
          %v468 = vadd.s32 %v465, %v459
          %v469 = vadd.s32 %v465, %v460
          %v470 = vadd.s32 %v465, %v461
          %v471 = vadd.s32 %v465, %v462
          %v472 = vadd.s32 %v465, %v463
          %v473 = vadd.s32 %v465, %v464
          %v474 = vlaneseq
          %v475 = vand.u32 %v474, 127
          %v476 = vstv %s436
          %v477 = vadd.s32 %v476, %v475
          %vm478 = vcmp.lt.s32.totalorder %v477, 8
          %vm479 = vcmp.ne.s32.totalorder %v466, %v477
          %vm480 = vcmp.ne.s32.totalorder %v467, %v477
          %vm481 = vcmp.ne.s32.totalorder %v468, %v477
          %vm482 = vcmp.ne.s32.totalorder %v469, %v477
          %vm483 = vcmp.ne.s32.totalorder %v470, %v477
          %vm484 = vcmp.ne.s32.totalorder %v471, %v477
          %vm485 = vcmp.ne.s32.totalorder %v472, %v477
          %vm486 = vcmp.ne.s32.totalorder %v473, %v477
          %v487 = vsel %vm478, 1, 0
          %vm488 = vcmp.eq.s32.totalorder %v487, 1
          %vm489 = vmand %vm488, %vm479
          %vm490 = vmand %vm488, %vm480
          %vm491 = vmand %vm488, %vm481
          %vm492 = vmand %vm488, %vm482
          %vm493 = vmand %vm488, %vm483
          %vm494 = vmand %vm488, %vm484
          %vm495 = vmand %vm488, %vm485
          %vm496 = vmand %vm488, %vm486
          %v497 = vsel %vm488, %v397, -1e+30
          %v498 = vsel %vm488, %v402, -1e+30
          %v499 = vsel %vm488, %v407, -1e+30
          %v500 = vsel %vm488, %v412, -1e+30
          %v501 = vsel %vm488, %v417, -1e+30
          %v502 = vsel %vm488, %v422, -1e+30
          %v503 = vsel %vm488, %v427, -1e+30
          %v504 = vsel %vm488, %v432, -1e+30
          %505 = vmax.xlane.f32.xlu0 %v497
          %v506 = vpop.xlane.xlu0 %505
          %507 = vmax.xlane.f32.xlu0 %v498
          %v508 = vpop.xlane.xlu0 %507
          %509 = vmax.xlane.f32.xlu0 %v499
          %v510 = vpop.xlane.xlu0 %509
          %511 = vmax.xlane.f32.xlu0 %v500
          %v512 = vpop.xlane.xlu0 %511
          %513 = vmax.xlane.f32.xlu0 %v501
          %v514 = vpop.xlane.xlu0 %513
          %515 = vmax.xlane.f32.xlu0 %v502
          %v516 = vpop.xlane.xlu0 %515
          %517 = vmax.xlane.f32.xlu0 %v503
          %v518 = vpop.xlane.xlu0 %517
          %519 = vmax.xlane.f32.xlu0 %v504
          %v520 = vpop.xlane.xlu0 %519
          %v521 = vmax.f32 %v445, %v506
          %v522 = vmax.f32 %v446, %v508
          %v523 = vmax.f32 %v447, %v510
          %v524 = vmax.f32 %v448, %v512
          %v525 = vmax.f32 %v449, %v514
          %v526 = vmax.f32 %v450, %v516
          %v527 = vmax.f32 %v451, %v518
          %v528 = vmax.f32 %v452, %v520
          %530 = vset.pattern.permute.xlu0 0
          %531 = vperm.xlu0 %530, %v521
          %v532 = vpop.permute.xlu0 %531
          %535 = vset.pattern.permute.xlu0 0
          %536 = vperm.xlu0 %535, %v522
          %v537 = vpop.permute.xlu0 %536
          %540 = vset.pattern.permute.xlu0 0
          %541 = vperm.xlu0 %540, %v523
          %v542 = vpop.permute.xlu0 %541
          %545 = vset.pattern.permute.xlu0 0
          %546 = vperm.xlu0 %545, %v524
          %v547 = vpop.permute.xlu0 %546
          %550 = vset.pattern.permute.xlu0 0
          %551 = vperm.xlu0 %550, %v525
          %v552 = vpop.permute.xlu0 %551
          %555 = vset.pattern.permute.xlu0 0
          %556 = vperm.xlu0 %555, %v526
          %v557 = vpop.permute.xlu0 %556
          %560 = vset.pattern.permute.xlu0 0
          %561 = vperm.xlu0 %560, %v527
          %v562 = vpop.permute.xlu0 %561
          %565 = vset.pattern.permute.xlu0 0
          %566 = vperm.xlu0 %565, %v528
          %v567 = vpop.permute.xlu0 %566
          %v569 = vsub.f32 %v397, %v532
          %v570 = vsub.f32 %v402, %v537
          %v571 = vsub.f32 %v407, %v542
          %v572 = vsub.f32 %v412, %v547
          %v573 = vsub.f32 %v417, %v552
          %v574 = vsub.f32 %v422, %v557
          %v575 = vsub.f32 %v427, %v562
          %v576 = vsub.f32 %v432, %v567
          %v577 = vmul.f32 %v569, 1.442695
          %v578 = vpow.pop %v577
          %v579 = vmul.f32 %v570, 1.442695
          %v580 = vpow.pop %v579
          %v581 = vmul.f32 %v571, 1.442695
          %v582 = vpow.pop %v581
          %v583 = vmul.f32 %v572, 1.442695
          %v584 = vpow.pop %v583
          %v585 = vmul.f32 %v573, 1.442695
          %v586 = vpow.pop %v585
          %v587 = vmul.f32 %v574, 1.442695
          %v588 = vpow.pop %v587
          %v589 = vmul.f32 %v575, 1.442695
          %v590 = vpow.pop %v589
          %v591 = vmul.f32 %v576, 1.442695
          %v592 = vpow.pop %v591
          %v593 = vsel %vm489, %v578, 0.0
          %v594 = vsel %vm490, %v580, 0.0
          %v595 = vsel %vm491, %v582, 0.0
          %v596 = vsel %vm492, %v584, 0.0
          %v597 = vsel %vm493, %v586, 0.0
          %v598 = vsel %vm494, %v588, 0.0
          %v599 = vsel %vm495, %v590, 0.0
          %v600 = vsel %vm496, %v592, 0.0
          %v601 = vsub.f32 %v445, %v521
          %v602 = vsub.f32 %v446, %v522
          %v603 = vsub.f32 %v447, %v523
          %v604 = vsub.f32 %v448, %v524
          %v605 = vsub.f32 %v449, %v525
          %v606 = vsub.f32 %v450, %v526
          %v607 = vsub.f32 %v451, %v527
          %v608 = vsub.f32 %v452, %v528
          %v609 = vmul.f32 %v601, 1.442695
          %v610 = vpow.pop %v609
          %v611 = vmul.f32 %v602, 1.442695
          %v612 = vpow.pop %v611
          %v613 = vmul.f32 %v603, 1.442695
          %v614 = vpow.pop %v613
          %v615 = vmul.f32 %v604, 1.442695
          %v616 = vpow.pop %v615
          %v617 = vmul.f32 %v605, 1.442695
          %v618 = vpow.pop %v617
          %v619 = vmul.f32 %v606, 1.442695
          %v620 = vpow.pop %v619
          %v621 = vmul.f32 %v607, 1.442695
          %v622 = vpow.pop %v621
          %v623 = vmul.f32 %v608, 1.442695
          %v624 = vpow.pop %v623
          %v625 = vld [vmem:[#allocation3] sm:$0xff]
          %v626 = vld [vmem:[#allocation3 + $0x8] sm:$0xff]
          %v627 = vld [vmem:[#allocation3 + $0x10] sm:$0xff]
          %v628 = vld [vmem:[#allocation3 + $0x18] sm:$0xff]
          %v629 = vld [vmem:[#allocation3 + $0x20] sm:$0xff]
          %v630 = vld [vmem:[#allocation3 + $0x28] sm:$0xff]
          %v631 = vld [vmem:[#allocation3 + $0x30] sm:$0xff]
          %v632 = vld [vmem:[#allocation3 + $0x38] sm:$0xff]
          %v633 = vmul.f32 %v610, %v625
          %v634 = vmul.f32 %v612, %v626
          %v635 = vmul.f32 %v614, %v627
          %v636 = vmul.f32 %v616, %v628
          %v637 = vmul.f32 %v618, %v629
          %v638 = vmul.f32 %v620, %v630
          %v639 = vmul.f32 %v622, %v631
          %v640 = vmul.f32 %v624, %v632
          %641 = vadd.xlane.f32.xlu0 %v593
          %v642 = vpop.xlane.xlu0 %641
          %643 = vadd.xlane.f32.xlu0 %v594
          %v644 = vpop.xlane.xlu0 %643
          %645 = vadd.xlane.f32.xlu0 %v595
          %v646 = vpop.xlane.xlu0 %645
          %647 = vadd.xlane.f32.xlu0 %v596
          %v648 = vpop.xlane.xlu0 %647
          %649 = vadd.xlane.f32.xlu0 %v597
          %v650 = vpop.xlane.xlu0 %649
          %651 = vadd.xlane.f32.xlu0 %v598
          %v652 = vpop.xlane.xlu0 %651
          %653 = vadd.xlane.f32.xlu0 %v599
          %v654 = vpop.xlane.xlu0 %653
          %655 = vadd.xlane.f32.xlu0 %v600
          %v656 = vpop.xlane.xlu0 %655
          %v657 = vadd.f32 %v633, %v642
          %v658 = vadd.f32 %v634, %v644
          %v659 = vadd.f32 %v635, %v646
          %v660 = vadd.f32 %v636, %v648
          %v661 = vadd.f32 %v637, %v650
          %v662 = vadd.f32 %v638, %v652
          %v663 = vadd.f32 %v639, %v654
          %v664 = vadd.f32 %v640, %v656
          %vm665 = vcmask 7168
          %666 = vst.msk [vmem:[#allocation3] sm:$0xff] %vm665, %v657
          %667 = vst.msk [vmem:[#allocation3 + $0x8] sm:$0xff] %vm665, %v658
          %668 = vst.msk [vmem:[#allocation3 + $0x10] sm:$0xff] %vm665, %v659
          %669 = vst.msk [vmem:[#allocation3 + $0x18] sm:$0xff] %vm665, %v660
          %670 = vst.msk [vmem:[#allocation3 + $0x20] sm:$0xff] %vm665, %v661
          %671 = vst.msk [vmem:[#allocation3 + $0x28] sm:$0xff] %vm665, %v662
          %672 = vst.msk [vmem:[#allocation3 + $0x30] sm:$0xff] %vm665, %v663
          %673 = vst.msk [vmem:[#allocation3 + $0x38] sm:$0xff] %vm665, %v664
          %674 = vst.msk [vmem:[#allocation2] sm:$0xff] %vm665, %v521
          %675 = vst.msk [vmem:[#allocation2 + $0x8] sm:$0xff] %vm665, %v522
          %676 = vst.msk [vmem:[#allocation2 + $0x10] sm:$0xff] %vm665, %v523
          %677 = vst.msk [vmem:[#allocation2 + $0x18] sm:$0xff] %vm665, %v524
          %678 = vst.msk [vmem:[#allocation2 + $0x20] sm:$0xff] %vm665, %v525
          %679 = vst.msk [vmem:[#allocation2 + $0x28] sm:$0xff] %vm665, %v526
          %680 = vst.msk [vmem:[#allocation2 + $0x30] sm:$0xff] %vm665, %v527
          %681 = vst.msk [vmem:[#allocation2 + $0x38] sm:$0xff] %vm665, %v528
        $region44: #{tpu_custom_call.1} parent=35 // pred_fallthru
          _
        %p682 = pneg %p444
        // Predicated region
        $region45: #{tpu_custom_call.1} parent=35 // pred_check
          _
        $region46: #{tpu_custom_call.1} parent=35 // pred_check_branch
          %684 = sbr.rel (%p444) target = $region48
        $region47: #{tpu_custom_call.1} parent=35 // pred_region
          %685 = vmax.xlane.f32.xlu0 %v397
          %v686 = vpop.xlane.xlu0 %685
          %687 = vmax.xlane.f32.xlu0 %v402
          %v688 = vpop.xlane.xlu0 %687
          %689 = vmax.xlane.f32.xlu0 %v407
          %v690 = vpop.xlane.xlu0 %689
          %691 = vmax.xlane.f32.xlu0 %v412
          %v692 = vpop.xlane.xlu0 %691
          %693 = vmax.xlane.f32.xlu0 %v417
          %v694 = vpop.xlane.xlu0 %693
          %695 = vmax.xlane.f32.xlu0 %v422
          %v696 = vpop.xlane.xlu0 %695
          %697 = vmax.xlane.f32.xlu0 %v427
          %v698 = vpop.xlane.xlu0 %697
          %699 = vmax.xlane.f32.xlu0 %v432
          %v700 = vpop.xlane.xlu0 %699
          %v701 = vmax.f32 %v445, %v686
          %v702 = vmax.f32 %v446, %v688
          %v703 = vmax.f32 %v447, %v690
          %v704 = vmax.f32 %v448, %v692
          %v705 = vmax.f32 %v449, %v694
          %v706 = vmax.f32 %v450, %v696
          %v707 = vmax.f32 %v451, %v698
          %v708 = vmax.f32 %v452, %v700
          %710 = vset.pattern.permute.xlu0 0
          %711 = vperm.xlu0 %710, %v701
          %v712 = vpop.permute.xlu0 %711
          %715 = vset.pattern.permute.xlu0 0
          %716 = vperm.xlu0 %715, %v702
          %v717 = vpop.permute.xlu0 %716
          %720 = vset.pattern.permute.xlu0 0
          %721 = vperm.xlu0 %720, %v703
          %v722 = vpop.permute.xlu0 %721
          %725 = vset.pattern.permute.xlu0 0
          %726 = vperm.xlu0 %725, %v704
          %v727 = vpop.permute.xlu0 %726
          %730 = vset.pattern.permute.xlu0 0
          %731 = vperm.xlu0 %730, %v705
          %v732 = vpop.permute.xlu0 %731
          %735 = vset.pattern.permute.xlu0 0
          %736 = vperm.xlu0 %735, %v706
          %v737 = vpop.permute.xlu0 %736
          %740 = vset.pattern.permute.xlu0 0
          %741 = vperm.xlu0 %740, %v707
          %v742 = vpop.permute.xlu0 %741
          %745 = vset.pattern.permute.xlu0 0
          %746 = vperm.xlu0 %745, %v708
          %v747 = vpop.permute.xlu0 %746
          %v749 = vsub.f32 %v397, %v712
          %v750 = vsub.f32 %v402, %v717
          %v751 = vsub.f32 %v407, %v722
          %v752 = vsub.f32 %v412, %v727
          %v753 = vsub.f32 %v417, %v732
          %v754 = vsub.f32 %v422, %v737
          %v755 = vsub.f32 %v427, %v742
          %v756 = vsub.f32 %v432, %v747
          %v757 = vmul.f32 %v749, 1.442695
          %v758 = vpow.pop %v757
          %v759 = vmul.f32 %v750, 1.442695
          %v760 = vpow.pop %v759
          %v761 = vmul.f32 %v751, 1.442695
          %v762 = vpow.pop %v761
          %v763 = vmul.f32 %v752, 1.442695
          %v764 = vpow.pop %v763
          %v765 = vmul.f32 %v753, 1.442695
          %v766 = vpow.pop %v765
          %v767 = vmul.f32 %v754, 1.442695
          %v768 = vpow.pop %v767
          %v769 = vmul.f32 %v755, 1.442695
          %v770 = vpow.pop %v769
          %v771 = vmul.f32 %v756, 1.442695
          %v772 = vpow.pop %v771
          %v773 = vsub.f32 %v445, %v701
          %v774 = vsub.f32 %v446, %v702
          %v775 = vsub.f32 %v447, %v703
          %v776 = vsub.f32 %v448, %v704
          %v777 = vsub.f32 %v449, %v705
          %v778 = vsub.f32 %v450, %v706
          %v779 = vsub.f32 %v451, %v707
          %v780 = vsub.f32 %v452, %v708
          %v781 = vmul.f32 %v773, 1.442695
          %v782 = vpow.pop %v781
          %v783 = vmul.f32 %v774, 1.442695
          %v784 = vpow.pop %v783
          %v785 = vmul.f32 %v775, 1.442695
          %v786 = vpow.pop %v785
          %v787 = vmul.f32 %v776, 1.442695
          %v788 = vpow.pop %v787
          %v789 = vmul.f32 %v777, 1.442695
          %v790 = vpow.pop %v789
          %v791 = vmul.f32 %v778, 1.442695
          %v792 = vpow.pop %v791
          %v793 = vmul.f32 %v779, 1.442695
          %v794 = vpow.pop %v793
          %v795 = vmul.f32 %v780, 1.442695
          %v796 = vpow.pop %v795
          %v797 = vld [vmem:[#allocation3] sm:$0xff]
          %v798 = vld [vmem:[#allocation3 + $0x8] sm:$0xff]
          %v799 = vld [vmem:[#allocation3 + $0x10] sm:$0xff]
          %v800 = vld [vmem:[#allocation3 + $0x18] sm:$0xff]
          %v801 = vld [vmem:[#allocation3 + $0x20] sm:$0xff]
          %v802 = vld [vmem:[#allocation3 + $0x28] sm:$0xff]
          %v803 = vld [vmem:[#allocation3 + $0x30] sm:$0xff]
          %v804 = vld [vmem:[#allocation3 + $0x38] sm:$0xff]
          %v805 = vmul.f32 %v782, %v797
          %v806 = vmul.f32 %v784, %v798
          %v807 = vmul.f32 %v786, %v799
          %v808 = vmul.f32 %v788, %v800
          %v809 = vmul.f32 %v790, %v801
          %v810 = vmul.f32 %v792, %v802
          %v811 = vmul.f32 %v794, %v803
          %v812 = vmul.f32 %v796, %v804
          %813 = vadd.xlane.f32.xlu0 %v758
          %v814 = vpop.xlane.xlu0 %813
          %815 = vadd.xlane.f32.xlu0 %v760
          %v816 = vpop.xlane.xlu0 %815
          %817 = vadd.xlane.f32.xlu0 %v762
          %v818 = vpop.xlane.xlu0 %817
          %819 = vadd.xlane.f32.xlu0 %v764
          %v820 = vpop.xlane.xlu0 %819
          %821 = vadd.xlane.f32.xlu0 %v766
          %v822 = vpop.xlane.xlu0 %821
          %823 = vadd.xlane.f32.xlu0 %v768
          %v824 = vpop.xlane.xlu0 %823
          %825 = vadd.xlane.f32.xlu0 %v770
          %v826 = vpop.xlane.xlu0 %825
          %827 = vadd.xlane.f32.xlu0 %v772
          %v828 = vpop.xlane.xlu0 %827
          %v829 = vadd.f32 %v805, %v814
          %v830 = vadd.f32 %v806, %v816
          %v831 = vadd.f32 %v807, %v818
          %v832 = vadd.f32 %v808, %v820
          %v833 = vadd.f32 %v809, %v822
          %v834 = vadd.f32 %v810, %v824
          %v835 = vadd.f32 %v811, %v826
          %v836 = vadd.f32 %v812, %v828
          %vm837 = vcmask 7168
          %838 = vst.msk [vmem:[#allocation3] sm:$0xff] %vm837, %v829
          %839 = vst.msk [vmem:[#allocation3 + $0x8] sm:$0xff] %vm837, %v830
          %840 = vst.msk [vmem:[#allocation3 + $0x10] sm:$0xff] %vm837, %v831
          %841 = vst.msk [vmem:[#allocation3 + $0x18] sm:$0xff] %vm837, %v832
          %842 = vst.msk [vmem:[#allocation3 + $0x20] sm:$0xff] %vm837, %v833
          %843 = vst.msk [vmem:[#allocation3 + $0x28] sm:$0xff] %vm837, %v834
          %844 = vst.msk [vmem:[#allocation3 + $0x30] sm:$0xff] %vm837, %v835
          %845 = vst.msk [vmem:[#allocation3 + $0x38] sm:$0xff] %vm837, %v836
          %846 = vst.msk [vmem:[#allocation2] sm:$0xff] %vm837, %v701
          %847 = vst.msk [vmem:[#allocation2 + $0x8] sm:$0xff] %vm837, %v702
          %848 = vst.msk [vmem:[#allocation2 + $0x10] sm:$0xff] %vm837, %v703
          %849 = vst.msk [vmem:[#allocation2 + $0x18] sm:$0xff] %vm837, %v704
          %850 = vst.msk [vmem:[#allocation2 + $0x20] sm:$0xff] %vm837, %v705
          %851 = vst.msk [vmem:[#allocation2 + $0x28] sm:$0xff] %vm837, %v706
          %852 = vst.msk [vmem:[#allocation2 + $0x30] sm:$0xff] %vm837, %v707
          %853 = vst.msk [vmem:[#allocation2 + $0x38] sm:$0xff] %vm837, %v708
        $region48: #{tpu_custom_call.1} parent=35 // pred_fallthru
          _
        // Predicated region
        $region49: #{tpu_custom_call.1} parent=35 // pred_check
          %p854 = pneg %p272
        $region50: #{tpu_custom_call.1} parent=35 // pred_check_branch
          %856 = sbr.rel (%p854) target = $region52
        $region51: #{tpu_custom_call.1} parent=35 // pred_region
          %v857 = vld [vmem:[#allocation2] sm:$0xff]
          %v858 = vld [vmem:[#allocation2 + $0x8] sm:$0xff]
          %v859 = vld [vmem:[#allocation2 + $0x10] sm:$0xff]
          %v860 = vld [vmem:[#allocation2 + $0x18] sm:$0xff]
          %v861 = vld [vmem:[#allocation2 + $0x20] sm:$0xff]
          %v862 = vld [vmem:[#allocation2 + $0x28] sm:$0xff]
          %v863 = vld [vmem:[#allocation2 + $0x30] sm:$0xff]
          %v864 = vld [vmem:[#allocation2 + $0x38] sm:$0xff]
          %v865 = vld [vmem:[#allocation3] sm:$0xff]
          %v866 = vld [vmem:[#allocation3 + $0x8] sm:$0xff]
          %v867 = vld [vmem:[#allocation3 + $0x10] sm:$0xff]
          %v868 = vld [vmem:[#allocation3 + $0x18] sm:$0xff]
          %v869 = vld [vmem:[#allocation3 + $0x20] sm:$0xff]
          %v870 = vld [vmem:[#allocation3 + $0x28] sm:$0xff]
          %v871 = vld [vmem:[#allocation3 + $0x30] sm:$0xff]
          %v872 = vld [vmem:[#allocation3 + $0x38] sm:$0xff]
          %v873 = vld [vmem:[%s253] sm:$0xff]
          %v874 = vld [vmem:[%s253 + $0x8] sm:$0xff]
          %v875 = vld [vmem:[%s253 + $0x10] sm:$0xff]
          %v876 = vld [vmem:[%s253 + $0x18] sm:$0xff]
          %v877 = vld [vmem:[%s253 + $0x20] sm:$0xff]
          %v878 = vld [vmem:[%s253 + $0x28] sm:$0xff]
          %v879 = vld [vmem:[%s253 + $0x30] sm:$0xff]
          %v880 = vld [vmem:[%s253 + $0x38] sm:$0xff]
          %v881 = vld [vmem:[%s259] sm:$0xff]
          %v882 = vld [vmem:[%s259 + $0x8] sm:$0xff]
          %v883 = vld [vmem:[%s259 + $0x10] sm:$0xff]
          %v884 = vld [vmem:[%s259 + $0x18] sm:$0xff]
          %v885 = vld [vmem:[%s259 + $0x20] sm:$0xff]
          %v886 = vld [vmem:[%s259 + $0x28] sm:$0xff]
          %v887 = vld [vmem:[%s259 + $0x30] sm:$0xff]
          %v888 = vld [vmem:[%s259 + $0x38] sm:$0xff]
          %v889 = vadd.f32 %v865, 1e-06
          %v890 = vadd.f32 %v866, 1e-06
          %v891 = vadd.f32 %v867, 1e-06
          %v892 = vadd.f32 %v868, 1e-06
          %v893 = vadd.f32 %v869, 1e-06
          %v894 = vadd.f32 %v870, 1e-06
          %v895 = vadd.f32 %v871, 1e-06
          %v896 = vadd.f32 %v872, 1e-06
          %v897 = vlog2.pop %v889
          %v898 = vmul.f32 %v897, 0.6931472
          %v899 = vlog2.pop %v890
          %v900 = vmul.f32 %v899, 0.6931472
          %v901 = vlog2.pop %v891
          %v902 = vmul.f32 %v901, 0.6931472
          %v903 = vlog2.pop %v892
          %v904 = vmul.f32 %v903, 0.6931472
          %v905 = vlog2.pop %v893
          %v906 = vmul.f32 %v905, 0.6931472
          %v907 = vlog2.pop %v894
          %v908 = vmul.f32 %v907, 0.6931472
          %v909 = vlog2.pop %v895
          %v910 = vmul.f32 %v909, 0.6931472
          %v911 = vlog2.pop %v896
          %v912 = vmul.f32 %v911, 0.6931472
          %v913 = vadd.f32 %v857, %v898
          %v914 = vadd.f32 %v858, %v900
          %v915 = vadd.f32 %v859, %v902
          %v916 = vadd.f32 %v860, %v904
          %v917 = vadd.f32 %v861, %v906
          %v918 = vadd.f32 %v862, %v908
          %v919 = vadd.f32 %v863, %v910
          %v920 = vadd.f32 %v864, %v912
          %v921 = vmul.f32 %v881, %v913
          %v922 = vmul.f32 %v882, %v914
          %v923 = vmul.f32 %v883, %v915
          %v924 = vmul.f32 %v884, %v916
          %v925 = vmul.f32 %v885, %v917
          %v926 = vmul.f32 %v886, %v918
          %v927 = vmul.f32 %v887, %v919
          %v928 = vmul.f32 %v888, %v920
          %v929 = vsub.f32 %v873, %v921
          %v930 = vsub.f32 %v874, %v922
          %v931 = vsub.f32 %v875, %v923
          %v932 = vsub.f32 %v876, %v924
          %v933 = vsub.f32 %v877, %v925
          %v934 = vsub.f32 %v878, %v926
          %v935 = vsub.f32 %v879, %v927
          %v936 = vsub.f32 %v880, %v928
          %v937 = vmax.f32 %v881, 1.0
          %v938 = vmax.f32 %v882, 1.0
          %v939 = vmax.f32 %v883, 1.0
          %v940 = vmax.f32 %v884, 1.0
          %v941 = vmax.f32 %v885, 1.0
          %v942 = vmax.f32 %v886, 1.0
          %v943 = vmax.f32 %v887, 1.0
          %v944 = vmax.f32 %v888, 1.0
          %v945 = vrcp.pop %v937
          %v946 = vmul.f32 %v929, %v945
          %v947 = vrcp.pop %v938
          %v948 = vmul.f32 %v930, %v947
          %v949 = vrcp.pop %v939
          %v950 = vmul.f32 %v931, %v949
          %v951 = vrcp.pop %v940
          %v952 = vmul.f32 %v932, %v951
          %v953 = vrcp.pop %v941
          %v954 = vmul.f32 %v933, %v953
          %v955 = vrcp.pop %v942
          %v956 = vmul.f32 %v934, %v955
          %v957 = vrcp.pop %v943
          %v958 = vmul.f32 %v935, %v957
          %v959 = vrcp.pop %v944
          %v960 = vmul.f32 %v936, %v959
          %v961 = vmul.f32 %v946, -0.35
          %v962 = vmul.f32 %v948, -0.35
          %v963 = vmul.f32 %v950, -0.35
          %v964 = vmul.f32 %v952, -0.35
          %v965 = vmul.f32 %v954, -0.35
          %v966 = vmul.f32 %v956, -0.35
          %v967 = vmul.f32 %v958, -0.35
          %v968 = vmul.f32 %v960, -0.35
          %vm969 = vcmp.gt.f32.partialorder %v881, 0.0
          %vm970 = vcmp.gt.f32.partialorder %v882, 0.0
          %vm971 = vcmp.gt.f32.partialorder %v883, 0.0
          %vm972 = vcmp.gt.f32.partialorder %v884, 0.0
          %vm973 = vcmp.gt.f32.partialorder %v885, 0.0
          %vm974 = vcmp.gt.f32.partialorder %v886, 0.0
          %vm975 = vcmp.gt.f32.partialorder %v887, 0.0
          %vm976 = vcmp.gt.f32.partialorder %v888, 0.0
          %v977 = vsel %vm969, %v961, 0.0
          %v978 = vsel %vm970, %v962, 0.0
          %v979 = vsel %vm971, %v963, 0.0
          %v980 = vsel %vm972, %v964, 0.0
          %v981 = vsel %vm973, %v965, 0.0
          %v982 = vsel %vm974, %v966, 0.0
          %v983 = vsel %vm975, %v967, 0.0
          %v984 = vsel %vm976, %v968, 0.0
          %986 = vset.pattern.permute.xlu0 0
          %987 = vperm.xlu0 %986, %v977
          %v988 = vpop.permute.xlu0 %987
          %991 = vset.pattern.permute.xlu0 0
          %992 = vperm.xlu0 %991, %v978
          %v993 = vpop.permute.xlu0 %992
          %996 = vset.pattern.permute.xlu0 0
          %997 = vperm.xlu0 %996, %v979
          %v998 = vpop.permute.xlu0 %997
          %1001 = vset.pattern.permute.xlu0 0
          %1002 = vperm.xlu0 %1001, %v980
          %v1003 = vpop.permute.xlu0 %1002
          %1006 = vset.pattern.permute.xlu0 0
          %1007 = vperm.xlu0 %1006, %v981
          %v1008 = vpop.permute.xlu0 %1007
          %1011 = vset.pattern.permute.xlu0 0
          %1012 = vperm.xlu0 %1011, %v982
          %v1013 = vpop.permute.xlu0 %1012
          %1016 = vset.pattern.permute.xlu0 0
          %1017 = vperm.xlu0 %1016, %v983
          %v1018 = vpop.permute.xlu0 %1017
          %1021 = vset.pattern.permute.xlu0 0
          %1022 = vperm.xlu0 %1021, %v984
          %v1023 = vpop.permute.xlu0 %1022
          %1025 = vst [vmem:[%s248] sm:$0xff] %v988
          %1026 = vst [vmem:[%s248 + $0x8] sm:$0xff] %v993
          %1027 = vst [vmem:[%s248 + $0x10] sm:$0xff] %v998
          %1028 = vst [vmem:[%s248 + $0x18] sm:$0xff] %v1003
          %1029 = vst [vmem:[%s248 + $0x20] sm:$0xff] %v1008
          %1030 = vst [vmem:[%s248 + $0x28] sm:$0xff] %v1013
          %1031 = vst [vmem:[%s248 + $0x30] sm:$0xff] %v1018
          %1032 = vst [vmem:[%s248 + $0x38] sm:$0xff] %v1023
        $region52: #{tpu_custom_call.1} parent=35 // pred_fallthru
          _
        %s1033 = sand.u32 %s142, 1
        %s1034 = scalar_lea.sflag [#allocation5], %s1033
        %s1035 = sand.u32 %s142, 1
        %s1036 = smul.addr %s1035, 64
        %s1037 = scalar_lea.vmem [#allocation4], %s1036
        // Predicated region
        $region53: #{tpu_custom_call.1} parent=35 // pred_check
          %p1038 = pneg %p152
        $region54: #{tpu_custom_call.1} parent=35 // pred_check_branch
          %1040 = sbr.rel (%p1038) target = $region56
        $region55: #{tpu_custom_call.1} parent=35 // pred_region
          %s1041 = smul.u32 8, %s22
          %s1043 = ssub.s32 1024, 1024
          %1044 = vsyncadd %s1034, %s1043
          %s1045 = smul.addr %s1041, 128
          %s1046 = scalar_lea.hbm %s4, %s1045
          %s1047 = sshll.u32 %s1037, 4
          %s1048 = int_to_ptr.vmem [resolvable:$true] %s1047
          %1053 = dma.vmem_to_hbm [thread:$0]  %s1048, 1024, %s1046, %s1034, 128, 128, 8
        $region56: #{tpu_custom_call.1} parent=35 // pred_fallthru
          _
      $region36: #{tpu_custom_call.1} parent=5 // pred_fallthru
        _
      %p1054 = scmp.le.s32.totalorder 2, %s13
      // Predicated region
      $region57: #{tpu_custom_call.1} parent=5 // pred_check
        %p1055 = pneg %p1054
      $region58: #{tpu_custom_call.1} parent=5 // pred_check_branch
        %1057 = sbr.rel (%p1055) target = $region60
      $region59: #{tpu_custom_call.1} parent=5 // pred_region
        %s1058 = ssub.s32 %s13, 2
        // Predicated region
        $region61: #{tpu_custom_call.1} parent=59 // pred_check
          %p1059 = pneg %p158
        $region62: #{tpu_custom_call.1} parent=59 // pred_check_branch
          %1061 = sbr.rel (%p1059) target = $region64
        $region63: #{tpu_custom_call.1} parent=59 // pred_region
          %s1062 = sand.u32 %s143, 1
          %s1063 = scalar_lea.sflag [#allocation5], %s1062
          %s1064 = sand.u32 %s143, 1
          %s1065 = smul.addr %s1064, 64
          %s1066 = scalar_lea.vmem [#allocation4], %s1065
          %1067 = dma.done %s1063, 1024
        $region64: #{tpu_custom_call.1} parent=59 // pred_fallthru
          _
      $region60: #{tpu_custom_call.1} parent=5 // pred_fallthru
        _
    $region6: #{tpu_custom_call.1} parent=1 // loop_footer
      %s17 = sadd.s32 1, %s13
    $region7: #{tpu_custom_call.1} parent=1 // loop_footer_branch
      %12 = sbr.rel target = $region3
    $region8: #{tpu_custom_call.1} parent=1 // loop_exit
      _
    %1068 = vsyncpa [#allocation5], 1
    %s1069 = scalar_lea.sflag [#allocation5], 1
    %1070 = vsyncpa %s1069, 1

</llo_original>
